<compile_context>
chip_gen: v5e
topology: v5e:2x2
jax: 0.10.0
libtpu: 0.0.40
codegen_flags: <defaults>
</compile_context>

<pallas_src>
import math

import jax
import jax.numpy as jnp
from jax.experimental import pallas as pl
from jax.experimental.pallas import tpu as pltpu


def _sin_kernel_plain(x_ref, fp_ref, out_ref):
    """x_ref: (tb, 1) f32; fp_ref: (2, D) f32 [freqs; phase]; out_ref: (tb, D)."""
    fp = fp_ref[...]
    ang = x_ref[...] * fp[0:1, :] + fp[1:2, :]          # VPU mul/add, broadcasts
    out_ref[...] = jnp.sin(ang).astype(out_ref.dtype)   # one EUP sin, full-width store


def _sin_kernel_packed(x_ref, e_ref, fp_ref, out_ref):
    """x_ref: (tb, G) f32; e_ref: (G, P) one-hot; fp_ref: (2, P); out_ref: (tb, P)."""
    # MXU one-hot matmul spreads x[r, g] across its D-lane group: xl[r, l] = x[r, l // D].
    xl = jnp.dot(x_ref[...], e_ref[...], preferred_element_type=jnp.float32)
    fp = fp_ref[...]
    ang = xl * fp[0:1, :] + fp[1:2, :]
    out_ref[...] = jnp.sin(ang).astype(out_ref.dtype)


def sinusoidal_position_embeddings(
    x: jax.Array,
    embedding_dim: int,
    theta: int,
    *,
    out_dtype=jnp.float32,
    block_rows: int | None = None,
) -> jax.Array:
    """Pallas equivalent of SinusoidalPositionEmbeddings.forward.

    Args:
      x: (B,) float tensor of noise variances / timesteps.
    Returns:
      (B, embedding_dim): [sin(x*f), cos(x*f)] concatenated on the last dim.
    """
    assert embedding_dim % 2 == 0, "embedding_dim must be even"
    half_dim = embedding_dim // 2
    assert half_dim > 1, "embedding_dim must be >= 4 (freq scale divides by half_dim - 1)"
    d = embedding_dim
    b = x.shape[0]

    # Host/XLA-side precompute (depends only on embedding_dim / theta).
    scale = math.log(theta) / (half_dim - 1)
    freqs = jnp.exp(-scale * jnp.arange(half_dim, dtype=jnp.float32))            # (half,)
    freqs_full = jnp.concatenate([freqs, freqs])                                  # (D,)
    phase_full = jnp.concatenate(
        [jnp.zeros((half_dim,), jnp.float32),
         jnp.full((half_dim,), math.pi / 2, dtype=jnp.float32)])                  # (D,)

    x = x.astype(jnp.float32)

    # Lane packing: put G batch rows into each 128-lane output row when D < 128.
    if d < 128 and 128 % d == 0:
        g = 128 // d
    else:
        g = 1                      # D >= 128 (or awkward D): one batch row per output row
    p = g * d                      # physical lane width of one output row

    rows = pl.cdiv(b, g)
    b_pad = rows * g
    if b_pad != b:
        x = jnp.pad(x, (0, b_pad - b))
    x_packed = x.reshape(rows, g)

    # Fused resident frequency/phase table, group-major: fp[:, g*D + d] = (freq[d], phase[d]).
    fp = jnp.stack([jnp.tile(freqs_full, g), jnp.tile(phase_full, g)])            # (2, P)

    out_bytes = jnp.dtype(out_dtype).itemsize

    if block_rows is None:
        # ~4 MiB of (output + padded x) per grid step; the x block pads to 128 lanes/row.
        per_row = p * out_bytes + 128 * 4
        target = max(8, ((4 * 1024 * 1024) // per_row) // 8 * 8)
        if rows > 8:
            # v7x megacore: keep at least 2 grid tiles so both TensorCores get work.
            half = ((pl.cdiv(rows, 2) + 7) // 8) * 8
            target = min(target, max(8, half))
        block_rows = min(rows, target)
    tb = block_rows
    grid = (pl.cdiv(rows, tb),)

    compiler_params = pltpu.CompilerParams(
        dimension_semantics=("parallel",),     # v7x: two TCs split the batch tiles
        vmem_limit_bytes=32 * 1024 * 1024,     # safe on v5e/v6e (128 MiB phys) & v7x (64 MiB)
    )

    if g == 1:
        out_packed = pl.pallas_call(
            _sin_kernel_plain,
            out_shape=jax.ShapeDtypeStruct((rows, p), out_dtype),
            grid=grid,
            in_specs=[
                pl.BlockSpec((tb, 1), lambda i: (i, 0)),        # x column tile
                pl.BlockSpec((2, p), lambda i: (0, 0)),         # fused freqs/phase (resident)
            ],
            out_specs=pl.BlockSpec((tb, p), lambda i: (i, 0)),
            compiler_params=compiler_params,
        )(x_packed, fp)
    else:
        # One-hot expansion matrix: expand[g, l] = 1 iff l // D == g.
        expand = (jnp.arange(p, dtype=jnp.int32)[None, :] // d
                  == jnp.arange(g, dtype=jnp.int32)[:, None]).astype(jnp.float32)  # (G, P)
        out_packed = pl.pallas_call(
            _sin_kernel_packed,
            out_shape=jax.ShapeDtypeStruct((rows, p), out_dtype),
            grid=grid,
            in_specs=[
                pl.BlockSpec((tb, g), lambda i: (i, 0)),        # packed x (contiguous HBM read)
                pl.BlockSpec((g, p), lambda i: (0, 0)),         # one-hot expand (resident)
                pl.BlockSpec((2, p), lambda i: (0, 0)),         # fused freqs/phase (resident)
            ],
            out_specs=pl.BlockSpec((tb, p), lambda i: (i, 0)),
            compiler_params=compiler_params,
        )(x_packed, expand, fp)

    # Group-major packing makes this a contiguous (copy-free) reshape.
    out = out_packed.reshape(b_pad, d)
    if b_pad != b:
        out = out[:b]
    return out


def _reference(x, embedding_dim, theta):
    half_dim = embedding_dim // 2
    emb = math.log(theta) / (half_dim - 1)
    emb = jnp.exp(jnp.arange(half_dim, dtype=jnp.float32) * -emb)
    emb = x.astype(jnp.float32)[:, None] * emb[None, :]
    return jnp.concatenate([jnp.sin(emb), jnp.cos(emb)], axis=-1)


if __name__ == "__main__":
    theta = 10000

    # --- test 1: D=32 packed path (G=4), noise variances in [0,1), single tile ---
    d1, b1 = 32, 8
    x1 = jax.random.uniform(jax.random.PRNGKey(0), (b1,), dtype=jnp.float32)
    out1 = jax.block_until_ready(sinusoidal_position_embeddings(x1, d1, theta))
    ref1 = _reference(x1, d1, theta)
    assert out1.shape == (b1, d1) and out1.dtype == jnp.float32, (out1.shape, out1.dtype)
    assert jnp.allclose(out1, ref1, atol=1e-5, rtol=1e-5), float(jnp.max(jnp.abs(out1 - ref1)))

    # --- test 2: D=32 packed, batch not divisible by G, multi-tile grid, timestep scale ---
    d2, b2 = 32, 78
    x2 = jax.random.uniform(jax.random.PRNGKey(1), (b2,), dtype=jnp.float32) * 1000.0
    out2 = jax.block_until_ready(
        sinusoidal_position_embeddings(x2, d2, theta, block_rows=8))
    ref2 = _reference(x2, d2, theta)
    assert out2.shape == (b2, d2), out2.shape
    # cos(a) = sin(a + pi/2) rounding bound is ~ulp(|angle|)/2 ~= 3e-5 at |angle| ~ 1000.
    assert jnp.allclose(out2, ref2, atol=1e-4, rtol=1e-4), float(jnp.max(jnp.abs(out2 - ref2)))

    # --- test 3: D=128 plain path (G=1), two grid tiles ---
    d3, b3 = 128, 16
    x3 = jax.random.uniform(jax.random.PRNGKey(2), (b3,), dtype=jnp.float32)
    out3 = jax.block_until_ready(
        sinusoidal_position_embeddings(x3, d3, theta, block_rows=8))
    ref3 = _reference(x3, d3, theta)
    assert out3.shape == (b3, d3), out3.shape
    assert jnp.allclose(out3, ref3, atol=1e-5, rtol=1e-5), float(jnp.max(jnp.abs(out3 - ref3)))

    # --- test 4: optional bf16 output (halves the HBM-writeback roofline) ---
    out4 = jax.block_until_ready(
        sinusoidal_position_embeddings(x1, d1, theta, out_dtype=jnp.bfloat16))
    assert out4.shape == (b1, d1) and out4.dtype == jnp.bfloat16, (out4.shape, out4.dtype)
    assert jnp.allclose(out4.astype(jnp.float32), ref1, atol=2e-2, rtol=2e-2)

    print("KERNEL_OK")
</pallas_src>

<mosaic_0001>
module attributes {stable_mosaic.version = 11 : i64} {
  func.func @_sin_kernel_packed(%arg0: i32, %arg1: memref<2x4xf32, #tpu.memory_space<vmem>>, %arg2: memref<4x128xf32, #tpu.memory_space<vmem>>, %arg3: memref<2x128xf32, #tpu.memory_space<vmem>>, %arg4: memref<2x128xf32, #tpu.memory_space<vmem>>) attributes {dimension_semantics = [#tpu.dimension_semantics<parallel>], iteration_bounds = array<i64: 1>, scalar_prefetch = 0 : i64, scratch_operands = 0 : i64, tpu.core_type = #tpu.core_type<tc>, window_params = [{transform_indices = @transform_0, window_bounds = array<i64: 2, 4>}, {pipeline_mode = #tpu.pipeline_mode<synchronous>, transform_indices = @transform_1, window_bounds = array<i64: 4, 128>}, {pipeline_mode = #tpu.pipeline_mode<synchronous>, transform_indices = @transform_2, window_bounds = array<i64: 2, 128>}, {transform_indices = @transform_3, window_bounds = array<i64: 2, 128>}]} {
    %c0 = arith.constant 0 : index
    %c0_0 = arith.constant 0 : index
    %0 = vector.load %arg1[%c0, %c0_0] : memref<2x4xf32, #tpu.memory_space<vmem>>, vector<2x4xf32>
    %c0_1 = arith.constant 0 : index
    %c0_2 = arith.constant 0 : index
    %1 = vector.load %arg2[%c0_1, %c0_2] : memref<4x128xf32, #tpu.memory_space<vmem>>, vector<4x128xf32>
    %cst = arith.constant dense<0.000000e+00> : vector<2x128xf32>
    %2 = tpu.matmul %0, %1, %cst {dimension_numbers = #tpu.dot_dimension_numbers<[1], [0], [0], [1], [0, 0, 1, 1], [], []>} : vector<2x4xf32>, vector<4x128xf32>, vector<2x128xf32> -> vector<2x128xf32>
    %c0_3 = arith.constant 0 : index
    %c0_4 = arith.constant 0 : index
    %3 = vector.load %arg3[%c0_3, %c0_4] : memref<2x128xf32, #tpu.memory_space<vmem>>, vector<2x128xf32>
    %4 = vector.extract_strided_slice %3 {offsets = [0, 0], sizes = [1, 128], strides = [1, 1]} : vector<2x128xf32> to vector<1x128xf32>
    %5 = vector.broadcast %4 : vector<1x128xf32> to vector<2x128xf32>
    %6 = arith.mulf %2, %5 : vector<2x128xf32>
    %7 = vector.extract_strided_slice %3 {offsets = [1, 0], sizes = [1, 128], strides = [1, 1]} : vector<2x128xf32> to vector<1x128xf32>
    %8 = vector.broadcast %7 : vector<1x128xf32> to vector<2x128xf32>
    %9 = arith.addf %6, %8 : vector<2x128xf32>
    %10 = math.sin %9 : vector<2x128xf32>
    %c0_5 = arith.constant 0 : index
    %c0_6 = arith.constant 0 : index
    %11 = vector.load %arg4[%c0_5, %c0_6] : memref<2x128xf32, #tpu.memory_space<vmem>>, vector<2x128xf32>
    tpu.vector_store %arg4[%c0_5, %c0_6], %10 {strides = array<i32>} : memref<2x128xf32, #tpu.memory_space<vmem>>, vector<2x128xf32>,
    return
  }
  func.func @transform_0(%arg0: i32) -> (i32, i32) {
    %c0_i32 = arith.constant 0 : i32
    %c0_i32_0 = arith.constant 0 : i32
    return %arg0, %c0_i32 : i32, i32
  }
  func.func @transform_1(%arg0: i32) -> (i32, i32) {
    %c0_i32 = arith.constant 0 : i32
    %c0_i32_0 = arith.constant 0 : i32
    %c0_i32_1 = arith.constant 0 : i32
    return %c0_i32, %c0_i32_0 : i32, i32
  }
  func.func @transform_2(%arg0: i32) -> (i32, i32) {
    %c0_i32 = arith.constant 0 : i32
    %c0_i32_0 = arith.constant 0 : i32
    %c0_i32_1 = arith.constant 0 : i32
    return %c0_i32, %c0_i32_0 : i32, i32
  }
  func.func @transform_3(%arg0: i32) -> (i32, i32) {
    %c0_i32 = arith.constant 0 : i32
    %c0_i32_0 = arith.constant 0 : i32
    return %arg0, %c0_i32 : i32, i32
  }
}

</mosaic_0001>

<llo_original>
// kernel: tpu_custom_call.1
$region0: #{tpu_custom_call.1}
  #allocation0 [shape = 'u32[]', space=smem, size = 0x4, offset = 0x4, fixed_abs, tag = 'smem constant byte address 0x4 - core index']
  #allocation1 [shape = 'u32[72,128]{1,0:T(1,128)}', space=vmem, size = 0x9000, scoped, tag = 'internal scratch']
  %s0 = inlined_call_operand.hbm [shape: f32[2,4], index: 0, kind: input, shape index: {}]
  %s1 = inlined_call_operand.hbm [shape: f32[4,128], index: 1, kind: input, shape index: {}]
  %s2 = inlined_call_operand.hbm [shape: f32[2,128], index: 2, kind: input, shape index: {}]
  %s3 = inlined_call_operand.hbm [shape: f32[2,128], index: 3, kind: output, shape index: {}]
  %s4 = sld [smem:[#allocation0]]
  $region34: #{tpu_custom_call.1} parent=0
    _
  %s6 = ssub.s32 1, %s4
  %s7 = scalar_select 0, %s6, %s4
  $region1: #{tpu_custom_call.1} parent=0
    #allocation2 [shape = 'u8[1024]{0}', space=vmem, size = 0x400, scoped, tag = 'input window, operand 0, single buffered']
    #allocation3 [shape = 's32[1]{0}', space=sflag, size = 0x4, scoped, tag = 'scoped memory for tpu_custom_call.1']
    #allocation4 [shape = 's32[1]{0}', space=sflag, size = 0x4, scoped, tag = 'scoped memory for tpu_custom_call.1']
    #allocation5 [shape = 'u8[2048]{0}', space=vmem, size = 0x800, scoped, tag = 'input window, operand 1, single buffered']
    #allocation6 [shape = 's32[1]{0}', space=sflag, size = 0x4, scoped, tag = 'scoped memory for tpu_custom_call.1']
    #allocation7 [shape = 'u8[1024]{0}', space=vmem, size = 0x400, scoped, tag = 'input window, operand 2, single buffered']
    #allocation8 [shape = 'u8[1024]{0}', space=vmem, size = 0x400, scoped, tag = 'output window, operand 0, single buffered']
    %8 = vsyncpa [#allocation3], 0
    %9 = vsyncpa [#allocation6], 0
    %10 = vsyncpa [#allocation4], 0
    // Predicated region
    $region2: #{tpu_custom_call.1} parent=1 // pred_check
      _
    $region3: #{tpu_custom_call.1} parent=1 // pred_check_branch
      %12 = sbr.rel (0) target = $region5
    $region4: #{tpu_custom_call.1} parent=1 // pred_region
      %14 = vsyncadd [#allocation3], 0
      %s16 = sshll.u32 %s0, 4
      %s17 = int_to_ptr.hbm [resolvable:$true] %s16
      %s18 = sshll.u32 [#allocation2], 4
      %s19 = int_to_ptr.vmem [resolvable:$true] %s18
      %21 = dma.hbm_to_vmem [thread:$0]  %s17, 32, %s19, [#allocation3]
    $region5: #{tpu_custom_call.1} parent=1 // pred_fallthru
      _
    // Predicated region
    $region6: #{tpu_custom_call.1} parent=1 // pred_check
      _
    $region7: #{tpu_custom_call.1} parent=1 // pred_check_branch
      %23 = sbr.rel (0) target = $region9
    $region8: #{tpu_custom_call.1} parent=1 // pred_region
      %25 = vsyncadd [#allocation6], 0
      %s27 = sshll.u32 %s1, 4
      %s28 = int_to_ptr.hbm [resolvable:$true] %s27
      %s29 = sshll.u32 [#allocation5], 4
      %s30 = int_to_ptr.vmem [resolvable:$true] %s29
      %32 = dma.hbm_to_vmem [thread:$0]  %s28, 64, %s30, [#allocation6]
    $region9: #{tpu_custom_call.1} parent=1 // pred_fallthru
      _
    // Predicated region
    $region10: #{tpu_custom_call.1} parent=1 // pred_check
      _
    $region11: #{tpu_custom_call.1} parent=1 // pred_check_branch
      %34 = sbr.rel (0) target = $region13
    $region12: #{tpu_custom_call.1} parent=1 // pred_region
      %36 = vsyncadd [#allocation6], 0
      %s38 = sshll.u32 %s2, 4
      %s39 = int_to_ptr.hbm [resolvable:$true] %s38
      %s40 = sshll.u32 [#allocation7], 4
      %s41 = int_to_ptr.vmem [resolvable:$true] %s40
      %43 = dma.hbm_to_vmem [thread:$0]  %s39, 32, %s41, [#allocation6]
    $region13: #{tpu_custom_call.1} parent=1 // pred_fallthru
      _
    // Predicated region
    $region14: #{tpu_custom_call.1} parent=1 // pred_check
      _
    $region15: #{tpu_custom_call.1} parent=1 // pred_check_branch
      %45 = sbr.rel (0) target = $region17
    $region16: #{tpu_custom_call.1} parent=1 // pred_region
      %47 = dma.done [#allocation3], 32
    $region17: #{tpu_custom_call.1} parent=1 // pred_fallthru
      _
    // Predicated region
    $region18: #{tpu_custom_call.1} parent=1 // pred_check
      _
    $region19: #{tpu_custom_call.1} parent=1 // pred_check_branch
      %49 = sbr.rel (0) target = $region21
    $region20: #{tpu_custom_call.1} parent=1 // pred_region
      %51 = dma.done [#allocation6], 64
    $region21: #{tpu_custom_call.1} parent=1 // pred_fallthru
      _
    // Predicated region
    $region22: #{tpu_custom_call.1} parent=1 // pred_check
      _
    $region23: #{tpu_custom_call.1} parent=1 // pred_check_branch
      %53 = sbr.rel (0) target = $region25
    $region24: #{tpu_custom_call.1} parent=1 // pred_region
      %55 = dma.done [#allocation6], 32
    $region25: #{tpu_custom_call.1} parent=1 // pred_fallthru
      _
    %v56 = vld [vmem:[#allocation2] sm:$0x3]
    %v57 = vld [vmem:[#allocation5] sm:$0xf]
    %vm58 = vcmask 31744
    %v60 = vsel %vm58, %v56, 0
    %vm62 = vcmask 1043456
    %v64 = vsel %vm62, %v57, 0
    %66 = vmatpush.msra.mxu0 0.0
    %67 = vmatpush.msra.mxu0 0.0
    %68 = vmatpush.msra.mxu0 0.0
    %69 = vmatpush.msra.mxu0 0.0
    %70 = vmatpush.msra.mxu0 0.0
    %71 = vmatpush.msra.mxu0 0.0
    %72 = vmatpush.msra.mxu0 0.0
    %73 = vmatpush.msra.mxu0 0.0
    %74 = vmatpush.msra.mxu0 0.0
    %75 = vmatpush.msra.mxu0 0.0
    %76 = vmatpush.msra.mxu0 0.0
    %77 = vmatpush.msra.mxu0 0.0
    %78 = vmatpush.msra.mxu0 0.0
    %79 = vmatpush.msra.mxu0 0.0
    %80 = vmatpush.msra.mxu0 0.0
    %81 = vmatpush.msra.mxu0 %v64
    %82 = vmatmul.f32.gmra.mxu0 %v60
    %v83 = vpop.f32.mrf.mxu0
    %v84 = vadd.f32 0.0, %v83
    %85 = vdwg.mxu0
    %v86 = vld [vmem:[#allocation7] sm:$0x3]
    %v87 = vperm.slane %v86, 0
    %v88 = vmul.f32 %v84, %v87
    %v89 = vperm.slane %v86, 1
    %v90 = vadd.f32 %v88, %v89
    %v91 = vand.u32 2147483647, %v90
    %vm92 = vcmp.le.f32.partialorder %v91, 0.7853982
    %vm93 = vcmp.lt.s32.totalorder %v90, 0
    %v94 = vand.u32 %v90, 2139095040
    %v95 = vshrl.u32 %v94, 23
    %v96 = vsub.s32 %v95, 127
    %v97 = vand.u32 2147483647, %v90
    %v98 = vand.u32 %v97, 8388607
    %v99 = vor.u32 %v98, 8388608
    %v100 = vsub.s32 0, %v99
    %v101 = vadd.s32 %v96, 1
    %vm102 = vcmp.gt.s32.totalorder %v101, 0
    %v103 = vsel %vm102, %v101, 0
    %v104 = vshrl.u32 %v103, 5
    %v105 = vand.u32 %v103, 31
    %v106 = vsub.s32 32, %v105
    %v107 = vshrl.u32 683565275, %v106
    %v108 = vshll.u32 683565275, %v105
    %v109 = vshrl.u32 2475754826, %v106
    %v110 = vor.u32 %v108, %v109
    %v111 = vshll.u32 2475754826, %v105
    %v112 = vshrl.u32 2131351028, %v106
    %v113 = vor.u32 %v111, %v112
    %v114 = vshll.u32 2131351028, %v105
    %v115 = vshrl.u32 2102212464, %v106
    %v116 = vor.u32 %v114, %v115
    %v117 = vshll.u32 2102212464, %v105
    %v118 = vshrl.u32 920167782, %v106
    %v119 = vor.u32 %v117, %v118
    %v120 = vshll.u32 920167782, %v105
    %v121 = vshrl.u32 1326507024, %v106
    %v122 = vor.u32 %v120, %v121
    %vm123 = vcmp.lt.s32.totalorder %v104, 1
    %vm124 = vcmp.lt.s32.totalorder %v104, 2
    %vm125 = vcmp.lt.s32.totalorder %v104, 3
    %vm126 = vcmp.lt.s32.totalorder %v104, 4
    %v127 = vsel %vm123, %v107, %v110
    %v128 = vsel %vm126, %v116, 2102212464
    %v129 = vsel %vm125, %v113, %v128
    %v130 = vsel %vm124, %v127, %v129
    %v131 = vsel %vm123, %v110, %v113
    %v132 = vsel %vm126, %v119, 920167782
    %v133 = vsel %vm125, %v116, %v132
    %v134 = vsel %vm124, %v131, %v133
    %v135 = vsel %vm123, %v113, %v116
    %v136 = vsel %vm126, %v122, 1326507024
    %v137 = vsel %vm125, %v119, %v136
    %v138 = vsel %vm124, %v135, %v137
    %v139 = vshll.u32 %v99, 8
    %v140 = vand.u32 %v139, 65535
    %v141 = vshrl.u32 %v139, 16
    %v142 = vand.u32 %v138, 65535
    %v143 = vshrl.u32 %v138, 16
    %v144 = vmul.u32 %v140, %v142
    %v145 = vmul.u32 %v140, %v143
    %v146 = vmul.u32 %v141, %v142
    %v147 = vmul.u32 %v141, %v143
    %v148 = vshll.u32 %v145, 16
    %v149 = vshrl.u32 %v145, 16
    %v150 = vshll.u32 %v146, 16
    %v151 = vshrl.u32 %v146, 16
    %vm152 = vc.u32 %v144, %v148
    %v153 = vsel %vm152, 1, 0
    %v154 = vadd.s32 %v144, %v148
    %v155 = vadd.s32 %v147, %v153
    %vm156 = vc.u32 %v154, %v150
    %v157 = vsel %vm156, 1, 0
    %v158 = vadd.s32 %v154, %v150
    %v159 = vadd.s32 %v155, %v157
    %v160 = vadd.s32 %v159, %v149
    %v161 = vadd.s32 %v160, %v151
    %v162 = vand.u32 %v139, 65535
    %v163 = vshrl.u32 %v139, 16
    %v164 = vand.u32 %v134, 65535
    %v165 = vshrl.u32 %v134, 16
    %v166 = vmul.u32 %v162, %v164
    %v167 = vmul.u32 %v162, %v165
    %v168 = vmul.u32 %v163, %v164
    %v169 = vmul.u32 %v163, %v165
    %v170 = vshll.u32 %v167, 16
    %v171 = vshrl.u32 %v167, 16
    %v172 = vshll.u32 %v168, 16
    %v173 = vshrl.u32 %v168, 16
    %vm174 = vc.u32 %v166, %v170
    %v175 = vsel %vm174, 1, 0
    %v176 = vadd.s32 %v166, %v170
    %v177 = vadd.s32 %v169, %v175
    %vm178 = vc.u32 %v176, %v172
    %v179 = vsel %vm178, 1, 0
    %v180 = vadd.s32 %v176, %v172
    %v181 = vadd.s32 %v177, %v179
    %v182 = vadd.s32 %v181, %v171
    %v183 = vadd.s32 %v182, %v173
    %v184 = vmul.u32 %v139, %v130
    %v185 = vadd.s32 %v161, %v180
    %vm186 = vc.u32 %v161, %v180
    %v187 = vadd.s32 %v183, 1
    %v188 = vsel %vm186, %v187, %v183
    %v189 = vadd.s32 %v184, %v188
    %v190 = vadd.s32 %v189, 536870912
    %v191 = vshrl.u32 %v190, 30
    %v192 = vshll.u32 %v191, 30
    %v193 = vsub.s32 %v189, %v192
    %vm194 = vcmp.lt.s32.totalorder %v193, 0
    %v195 = vsub.s32 0, %v193
    %v196 = vsel %vm194, %v195, %v193
    %v197 = vclz %v196
    %v198 = vsub.s32 %v197, 2
    %vm199 = vcmp.gt.s32.totalorder 0, %v198
    %v200 = vsel %vm199, 0, %v198
    %v201 = vsub.s32 32, %v200
    %v202 = vshll.u32 %v193, %v200
    %v203 = vshrl.u32 %v185, %v201
    %v204 = vor.u32 %v202, %v203
    %v205 = vsub.s32 4294967266, %v200
    %v206 = vadd.s32 %v205, 127
    %v207 = vshll.u32 %v206, 23
    %v208 = vor.u32 4788187, %v207
    %v209 = vand.u32 2147483647, %v208
    %v211 = vcvt.s32.f32 %v204
    %v212 = vmul.f32 %v211, %v209
    %v213 = vxor.u32 %v212, 2147483648
    %v214 = vsel %vm93, %v213, %v212
    %v215 = vsub.s32 4, %v191
    %v216 = vsel %vm93, %v215, %v191
    %v217 = vsel %vm92, %v90, %v214
    %v218 = vsel %vm92, 0, %v216
    %v219 = vmul.f32 %v217, %v217
    %v220 = vmul.f32 %v219, -0.001358992
    %v221 = vadd.f32 %v220, 0.041655596
    %v222 = vmul.f32 %v219, %v221
    %v223 = vadd.f32 %v222, -0.4999988
    %v224 = vmul.f32 %v219, %v223
    %v225 = vadd.f32 1.0, %v224
    %v226 = vmul.f32 %v217, %v217
    %v227 = vmul.f32 %v226, -0.00019511016
    %v228 = vadd.f32 %v227, 0.008332121
    %v229 = vmul.f32 %v226, %v228
    %v230 = vadd.f32 %v229, -0.16666654
    %v231 = vmul.f32 %v226, %v230
    %v232 = vadd.f32 %v231, 1.0
    %v233 = vmul.f32 %v232, %v217
    %vm234 = vweird.f32 %v90
    %v235 = vadd.s32 %v218, 3
    %v236 = vand.u32 %v235, 3
    %vm237 = vcmp.lt.s32.totalorder %v236, 2
    %vm238 = vcmp.eq.s32.totalorder %v236, 0
    %v239 = vxor.u32 %v233, 2147483648
    %v240 = vsel %vm238, %v225, %v239
    %vm241 = vcmp.eq.s32.totalorder %v236, 2
    %v242 = vxor.u32 %v225, 2147483648
    %v243 = vsel %vm241, %v242, %v233
    %v244 = vsel %vm237, %v240, %v243
    %v245 = vsel %vm234, nan, %v244
    %246 = vst [vmem:[#allocation8] sm:$0x3] %v245
    // Predicated region
    $region26: #{tpu_custom_call.1} parent=1 // pred_check
      _
    $region27: #{tpu_custom_call.1} parent=1 // pred_check_branch
      %248 = sbr.rel (0) target = $region29
    $region28: #{tpu_custom_call.1} parent=1 // pred_region
      %250 = vsyncadd [#allocation4], 0
      %s252 = sshll.u32 [#allocation8], 4
      %s253 = int_to_ptr.vmem [resolvable:$true] %s252
      %s254 = sshll.u32 %s3, 4
      %s255 = int_to_ptr.hbm [resolvable:$true] %s254
      %257 = dma.vmem_to_hbm [thread:$0]  %s253, 32, %s255, [#allocation4]
    $region29: #{tpu_custom_call.1} parent=1 // pred_fallthru
      _
    // Predicated region
    $region30: #{tpu_custom_call.1} parent=1 // pred_check
      _
    $region31: #{tpu_custom_call.1} parent=1 // pred_check_branch
      %259 = sbr.rel (0) target = $region33
    $region32: #{tpu_custom_call.1} parent=1 // pred_region
      %261 = dma.done [#allocation4], 32
    $region33: #{tpu_custom_call.1} parent=1 // pred_fallthru
      _
    %262 = vsyncpa [#allocation3], 1
    %263 = vsyncpa [#allocation6], 1
    %264 = vsyncpa [#allocation4], 1

</llo_original>
